<compile_context>
chip_gen: v7x
topology: tpu7x:2x2x1
jax: 0.10.0
libtpu: 0.0.40
codegen_flags: <defaults>
</compile_context>

<pallas_src>
import functools

import jax
import jax.numpy as jnp
from jax import lax
from jax.experimental import pallas as pl
from jax.experimental.pallas import tpu as pltpu

EMB_DIM = 300
HID_DIM = 150
OUT_DIM = 1

# Lane/MXU-aligned padded sizes (zero padding -> exact numerics).
D_PAD = 384    # 300 -> 384 (multiple of 128)
H_PAD = 256    # 150 -> 256
O_PAD = 128    # 1   -> 128 (lane-dense output store)


def _round_up(x, m):
    return (x + m - 1) // m * m


def _fused_kernel(tok_ref, emb_ref, w1_ref, b1_ref, w2_ref, b2_ref,
                  w3_ref, b3_ref, out_ref, *, inv_s):
    """tok_ref: [TB, S] int32; emb/w*/b*: resident padded params; out: [TB, O_PAD]."""
    tok = tok_ref[...]                                    # [TB, S] int32
    tb, s = tok.shape
    v_pad = emb_ref.shape[0]

    # --- embedding lookup + mean pool as a counts @ E matmul -----------------
    # counts[b, v] = (#tokens in row b equal to v) / S, built by an unrolled
    # accumulation of 2D compares (one [TB, V_PAD] live tile, no 3D one-hot,
    # no cross-sublane XLU reduce).  1/S is folded into the select.
    # TODO(synk): for production vocab sizes (V >> few hundred) abandon the
    # counts@E formulation: keep the table in HBM (memory_space=pl.ANY) and
    # gather the S rows per tile via scalar-prefetched DMA, or mark resident
    # weights pl.Buffered(1); the one-hot path is O(V) work per token.
    lane_iota = lax.broadcasted_iota(jnp.int32, (1, v_pad), 1)   # [1, V_PAD]
    counts = jnp.zeros((tb, v_pad), jnp.float32)
    for si in range(s):                                   # S static -> fully unrolled
        eq = tok[:, si:si + 1] == lane_iota               # [TB, V_PAD] bool
        counts = counts + jnp.where(eq, jnp.float32(inv_s), jnp.float32(0.0))

    pooled = jnp.dot(counts, emb_ref[...],
                     preferred_element_type=jnp.float32)          # [TB, D_PAD]

    # --- fc1 -> relu -> fc2 -> relu -> fc3 -----------------------------------
    h1 = jnp.dot(pooled, w1_ref[...], preferred_element_type=jnp.float32)
    h1 = jnp.maximum(h1 + b1_ref[...], 0.0)                       # [TB, H_PAD]
    h2 = jnp.dot(h1, w2_ref[...], preferred_element_type=jnp.float32)
    h2 = jnp.maximum(h2 + b2_ref[...], 0.0)                       # [TB, H_PAD]
    out = jnp.dot(h2, w3_ref[...], preferred_element_type=jnp.float32)
    # TODO(synk): for very large B store a lane-dense [1, TB] row (real column
    # only) instead of the [TB, 128] padded slab to cut 128x HBM writeback.
    out_ref[...] = out + b3_ref[...]                              # [TB, O_PAD]


def pad_params(embedding_matrix, params):
    """Zero-pad embedding matrix and (pre-transposed [in, out]) weights to
    lane/MXU aligned shapes.  Done once, outside the hot path.
    TODO(synk): bf16 storage for emb/w1/w2 would halve VMEM and speed up the
    MXU on v6e, but breaks the 1e-4 f32 exactness requirement, so kept f32."""
    w1, b1, w2, b2, w3, b3 = params
    vocab, d = embedding_matrix.shape
    v_pad = max(_round_up(vocab, 8), 128)

    emb_p = jnp.zeros((v_pad, D_PAD), jnp.float32).at[:vocab, :d].set(embedding_matrix)
    w1_p = jnp.zeros((D_PAD, H_PAD), jnp.float32).at[:EMB_DIM, :HID_DIM].set(w1)
    b1_p = jnp.zeros((1, H_PAD), jnp.float32).at[0, :HID_DIM].set(b1)
    w2_p = jnp.zeros((H_PAD, H_PAD), jnp.float32).at[:HID_DIM, :HID_DIM].set(w2)
    b2_p = jnp.zeros((1, H_PAD), jnp.float32).at[0, :HID_DIM].set(b2)
    w3_p = jnp.zeros((H_PAD, O_PAD), jnp.float32).at[:HID_DIM, :OUT_DIM].set(w3)
    b3_p = jnp.zeros((1, O_PAD), jnp.float32).at[0, :OUT_DIM].set(b3)
    return emb_p, w1_p, b1_p, w2_p, b2_p, w3_p, b3_p


def _pick_block_b(batch, requested):
    """Batch tile selection: large tiles amortize per-step overhead; for
    batches that would otherwise be a single grid step, split into >=2 steps
    so v7x's second TensorCore gets work (harmless on single-TC v5e/v6e)."""
    b_aligned = _round_up(batch, 8)
    if b_aligned <= requested:
        tb = b_aligned
        if b_aligned >= 256:
            tb = max(128, _round_up(pl.cdiv(b_aligned, 2), 128))
    else:
        tb = requested
    return tb


def baseline_forward(token_ids, padded_params, *, block_b=512):
    """token_ids: [B, S] int32.  Returns logits [B, 1] float32."""
    emb_p, w1_p, b1_p, w2_p, b2_p, w3_p, b3_p = padded_params
    B, S = token_ids.shape
    v_pad = emb_p.shape[0]

    tb = _pick_block_b(B, block_b)
    b_pad = _round_up(B, tb)
    if b_pad != B:
        # Padded rows reuse token id 0; they are sliced off below, never reduced over.
        token_ids = jnp.pad(token_ids, ((0, b_pad - B), (0, 0)))

    grid = (b_pad // tb,)
    kernel = functools.partial(_fused_kernel, inv_s=1.0 / S)

    def resident(shape):
        # Weights/biases: same block every grid step -> stay resident in VMEM.
        return pl.BlockSpec(shape, lambda i: (0,) * len(shape))

    # --- VMEM budget computed from the actual footprint ----------------------
    resident_bytes = 4 * (emb_p.size + w1_p.size + b1_p.size + w2_p.size
                          + b2_p.size + w3_p.size + b3_p.size)
    io_bytes = 2 * 4 * (tb * S + tb * O_PAD)                # double-buffered in/out tiles
    temp_bytes = 4 * tb * (v_pad + D_PAD + 2 * H_PAD + O_PAD)  # live activations
    vmem_needed = 2 * resident_bytes + io_bytes + temp_bytes   # residents double-buffered
    vmem_limit = min(int(vmem_needed * 1.5) + (4 << 20), 60 << 20)  # stay under v7x 64 MiB

    flops = 2 * b_pad * (v_pad * D_PAD + D_PAD * H_PAD + H_PAD * H_PAD + H_PAD * O_PAD)
    bytes_accessed = 4 * (token_ids.size + emb_p.size + w1_p.size + w2_p.size
                          + w3_p.size + b1_p.size + b2_p.size + b3_p.size
                          + b_pad * O_PAD)

    out = pl.pallas_call(
        kernel,
        out_shape=jax.ShapeDtypeStruct((b_pad, O_PAD), jnp.float32),
        grid=grid,
        in_specs=[
            pl.BlockSpec((tb, S), lambda i: (i, 0)),        # token ids, batch-tiled
            resident((v_pad, D_PAD)),                       # embedding matrix
            resident((D_PAD, H_PAD)),                       # w1
            resident((1, H_PAD)),                           # b1
            resident((H_PAD, H_PAD)),                       # w2
            resident((1, H_PAD)),                           # b2
            resident((H_PAD, O_PAD)),                       # w3 (padded to 128 cols)
            resident((1, O_PAD)),                           # b3
        ],
        out_specs=pl.BlockSpec((tb, O_PAD), lambda i: (i, 0)),
        compiler_params=pltpu.CompilerParams(
            dimension_semantics=("parallel",),
            vmem_limit_bytes=vmem_limit,
        ),
        cost_estimate=pl.CostEstimate(
            flops=flops, transcendentals=0, bytes_accessed=bytes_accessed),
    )(token_ids, emb_p, w1_p, b1_p, w2_p, b2_p, w3_p, b3_p)

    return out[:B, :OUT_DIM]


def init_params(key):
    """Mirror BaselineModel.reset_parameters: kaiming_normal_(fan_in, relu)
    => std = sqrt(2 / fan_in); biases = 0.  Weights stored as [in, out]."""
    k1, k2, k3, k_emb = jax.random.split(key, 4)

    def kaiming(k, fan_in, fan_out):
        std = jnp.sqrt(2.0 / fan_in)
        return jax.random.normal(k, (fan_in, fan_out), jnp.float32) * std

    w1 = kaiming(k1, EMB_DIM, HID_DIM)
    b1 = jnp.zeros((HID_DIM,), jnp.float32)
    w2 = kaiming(k2, HID_DIM, HID_DIM)
    b2 = jnp.zeros((HID_DIM,), jnp.float32)
    w3 = kaiming(k3, HID_DIM, OUT_DIM)
    b3 = jnp.zeros((OUT_DIM,), jnp.float32)
    return (w1, b1, w2, b2, w3, b3), k_emb


if __name__ == "__main__":
    key = jax.random.PRNGKey(0)
    params, k_emb = init_params(key)

    VOCAB = 64
    B, S = 16, 8  # small batch of token-id sequences

    # nn.Embedding default init: N(0, 1)
    embedding_matrix = jax.random.normal(k_emb, (VOCAB, EMB_DIM), jnp.float32)

    k_tok = jax.random.fold_in(key, 123)
    token_ids = jax.random.randint(k_tok, (B, S), 0, VOCAB, dtype=jnp.int32)

    padded = pad_params(embedding_matrix, params)
    logits = baseline_forward(token_ids, padded)
    jax.block_until_ready(logits)

    # Reference check in plain JAX (same math, same params).
    # TODO(synk): training machinery (BCEWithLogitsLoss, optimizer, fit/eval
    # loops) is host-side PyTorch plumbing with no kernel equivalent; only the
    # forward pass is implemented here.
    w1, b1, w2, b2, w3, b3 = params
    emb = jnp.take(embedding_matrix, token_ids, axis=0)
    pooled = jnp.mean(emb, axis=1)
    ref = jnp.maximum(pooled @ w1 + b1, 0.0)
    ref = jnp.maximum(ref @ w2 + b2, 0.0)
    ref = ref @ w3 + b3

    assert logits.shape == (B, OUT_DIM)
    assert jnp.allclose(logits, ref, atol=1e-4, rtol=1e-4), float(
        jnp.max(jnp.abs(logits - ref)))

    print("KERNEL_OK")
</pallas_src>

<mosaic_0001>
module attributes {stable_mosaic.version = 11 : i64} {
  func.func @_fused_kernel(%arg0: i32, %arg1: memref<16x8xi32, #tpu.memory_space<vmem>>, %arg2: memref<128x384xf32, #tpu.memory_space<vmem>>, %arg3: memref<384x256xf32, #tpu.memory_space<vmem>>, %arg4: memref<1x256xf32, #tpu.memory_space<vmem>>, %arg5: memref<256x256xf32, #tpu.memory_space<vmem>>, %arg6: memref<1x256xf32, #tpu.memory_space<vmem>>, %arg7: memref<256x128xf32, #tpu.memory_space<vmem>>, %arg8: memref<1x128xf32, #tpu.memory_space<vmem>>, %arg9: memref<16x128xf32, #tpu.memory_space<vmem>>) attributes {dimension_semantics = [#tpu.dimension_semantics<parallel>], iteration_bounds = array<i64: 1>, scalar_prefetch = 0 : i64, scratch_operands = 0 : i64, tpu.core_type = #tpu.core_type<tc>, window_params = [{transform_indices = @transform_0, window_bounds = array<i64: 16, 8>}, {pipeline_mode = #tpu.pipeline_mode<synchronous>, transform_indices = @transform_1, window_bounds = array<i64: 128, 384>}, {pipeline_mode = #tpu.pipeline_mode<synchronous>, transform_indices = @transform_2, window_bounds = array<i64: 384, 256>}, {pipeline_mode = #tpu.pipeline_mode<synchronous>, transform_indices = @transform_3, window_bounds = array<i64: 1, 256>}, {pipeline_mode = #tpu.pipeline_mode<synchronous>, transform_indices = @transform_4, window_bounds = array<i64: 256, 256>}, {pipeline_mode = #tpu.pipeline_mode<synchronous>, transform_indices = @transform_5, window_bounds = array<i64: 1, 256>}, {pipeline_mode = #tpu.pipeline_mode<synchronous>, transform_indices = @transform_6, window_bounds = array<i64: 256, 128>}, {pipeline_mode = #tpu.pipeline_mode<synchronous>, transform_indices = @transform_7, window_bounds = array<i64: 1, 128>}, {transform_indices = @transform_8, window_bounds = array<i64: 16, 128>}]} {
    %c0 = arith.constant 0 : index
    %c0_0 = arith.constant 0 : index
    %0 = vector.load %arg1[%c0, %c0_0] : memref<16x8xi32, #tpu.memory_space<vmem>>, vector<16x8xi32>
    %1 = tpu.iota {dimensions = array<i32: 1>} : vector<1x128xi32>
    %cst = arith.constant 0.000000e+00 : f32
    %2 = vector.broadcast %cst : f32 to vector<16x128xf32>
    %3 = vector.extract_strided_slice %0 {offsets = [0, 0], sizes = [16, 1], strides = [1, 1]} : vector<16x8xi32> to vector<16x1xi32>
    %4 = vector.broadcast %3 : vector<16x1xi32> to vector<16x128xi32>
    %5 = vector.broadcast %1 : vector<1x128xi32> to vector<16x128xi32>
    %6 = arith.cmpi eq, %4, %5 : vector<16x128xi32>
    %cst_1 = arith.constant 1.250000e-01 : f32
    %cst_2 = arith.constant 0.000000e+00 : f32
    %7 = vector.broadcast %cst_1 : f32 to vector<16x128xf32>
    %8 = vector.broadcast %cst_2 : f32 to vector<16x128xf32>
    %9 = arith.select %6, %7, %8 : vector<16x128xi1>, vector<16x128xf32>
    %10 = arith.addf %2, %9 : vector<16x128xf32>
    %11 = vector.extract_strided_slice %0 {offsets = [0, 1], sizes = [16, 1], strides = [1, 1]} : vector<16x8xi32> to vector<16x1xi32>
    %12 = vector.broadcast %11 : vector<16x1xi32> to vector<16x128xi32>
    %13 = vector.broadcast %1 : vector<1x128xi32> to vector<16x128xi32>
    %14 = arith.cmpi eq, %12, %13 : vector<16x128xi32>
    %cst_3 = arith.constant 1.250000e-01 : f32
    %cst_4 = arith.constant 0.000000e+00 : f32
    %15 = vector.broadcast %cst_3 : f32 to vector<16x128xf32>
    %16 = vector.broadcast %cst_4 : f32 to vector<16x128xf32>
    %17 = arith.select %14, %15, %16 : vector<16x128xi1>, vector<16x128xf32>
    %18 = arith.addf %10, %17 : vector<16x128xf32>
    %19 = vector.extract_strided_slice %0 {offsets = [0, 2], sizes = [16, 1], strides = [1, 1]} : vector<16x8xi32> to vector<16x1xi32>
    %20 = vector.broadcast %19 : vector<16x1xi32> to vector<16x128xi32>
    %21 = vector.broadcast %1 : vector<1x128xi32> to vector<16x128xi32>
    %22 = arith.cmpi eq, %20, %21 : vector<16x128xi32>
    %cst_5 = arith.constant 1.250000e-01 : f32
    %cst_6 = arith.constant 0.000000e+00 : f32
    %23 = vector.broadcast %cst_5 : f32 to vector<16x128xf32>
    %24 = vector.broadcast %cst_6 : f32 to vector<16x128xf32>
    %25 = arith.select %22, %23, %24 : vector<16x128xi1>, vector<16x128xf32>
    %26 = arith.addf %18, %25 : vector<16x128xf32>
    %27 = vector.extract_strided_slice %0 {offsets = [0, 3], sizes = [16, 1], strides = [1, 1]} : vector<16x8xi32> to vector<16x1xi32>
    %28 = vector.broadcast %27 : vector<16x1xi32> to vector<16x128xi32>
    %29 = vector.broadcast %1 : vector<1x128xi32> to vector<16x128xi32>
    %30 = arith.cmpi eq, %28, %29 : vector<16x128xi32>
    %cst_7 = arith.constant 1.250000e-01 : f32
    %cst_8 = arith.constant 0.000000e+00 : f32
    %31 = vector.broadcast %cst_7 : f32 to vector<16x128xf32>
    %32 = vector.broadcast %cst_8 : f32 to vector<16x128xf32>
    %33 = arith.select %30, %31, %32 : vector<16x128xi1>, vector<16x128xf32>
    %34 = arith.addf %26, %33 : vector<16x128xf32>
    %35 = vector.extract_strided_slice %0 {offsets = [0, 4], sizes = [16, 1], strides = [1, 1]} : vector<16x8xi32> to vector<16x1xi32>
    %36 = vector.broadcast %35 : vector<16x1xi32> to vector<16x128xi32>
    %37 = vector.broadcast %1 : vector<1x128xi32> to vector<16x128xi32>
    %38 = arith.cmpi eq, %36, %37 : vector<16x128xi32>
    %cst_9 = arith.constant 1.250000e-01 : f32
    %cst_10 = arith.constant 0.000000e+00 : f32
    %39 = vector.broadcast %cst_9 : f32 to vector<16x128xf32>
    %40 = vector.broadcast %cst_10 : f32 to vector<16x128xf32>
    %41 = arith.select %38, %39, %40 : vector<16x128xi1>, vector<16x128xf32>
    %42 = arith.addf %34, %41 : vector<16x128xf32>
    %43 = vector.extract_strided_slice %0 {offsets = [0, 5], sizes = [16, 1], strides = [1, 1]} : vector<16x8xi32> to vector<16x1xi32>
    %44 = vector.broadcast %43 : vector<16x1xi32> to vector<16x128xi32>
    %45 = vector.broadcast %1 : vector<1x128xi32> to vector<16x128xi32>
    %46 = arith.cmpi eq, %44, %45 : vector<16x128xi32>
    %cst_11 = arith.constant 1.250000e-01 : f32
    %cst_12 = arith.constant 0.000000e+00 : f32
    %47 = vector.broadcast %cst_11 : f32 to vector<16x128xf32>
    %48 = vector.broadcast %cst_12 : f32 to vector<16x128xf32>
    %49 = arith.select %46, %47, %48 : vector<16x128xi1>, vector<16x128xf32>
    %50 = arith.addf %42, %49 : vector<16x128xf32>
    %51 = vector.extract_strided_slice %0 {offsets = [0, 6], sizes = [16, 1], strides = [1, 1]} : vector<16x8xi32> to vector<16x1xi32>
    %52 = vector.broadcast %51 : vector<16x1xi32> to vector<16x128xi32>
    %53 = vector.broadcast %1 : vector<1x128xi32> to vector<16x128xi32>
    %54 = arith.cmpi eq, %52, %53 : vector<16x128xi32>
    %cst_13 = arith.constant 1.250000e-01 : f32
    %cst_14 = arith.constant 0.000000e+00 : f32
    %55 = vector.broadcast %cst_13 : f32 to vector<16x128xf32>
    %56 = vector.broadcast %cst_14 : f32 to vector<16x128xf32>
    %57 = arith.select %54, %55, %56 : vector<16x128xi1>, vector<16x128xf32>
    %58 = arith.addf %50, %57 : vector<16x128xf32>
    %59 = vector.extract_strided_slice %0 {offsets = [0, 7], sizes = [16, 1], strides = [1, 1]} : vector<16x8xi32> to vector<16x1xi32>
    %60 = vector.broadcast %59 : vector<16x1xi32> to vector<16x128xi32>
    %61 = vector.broadcast %1 : vector<1x128xi32> to vector<16x128xi32>
    %62 = arith.cmpi eq, %60, %61 : vector<16x128xi32>
    %cst_15 = arith.constant 1.250000e-01 : f32
    %cst_16 = arith.constant 0.000000e+00 : f32
    %63 = vector.broadcast %cst_15 : f32 to vector<16x128xf32>
    %64 = vector.broadcast %cst_16 : f32 to vector<16x128xf32>
    %65 = arith.select %62, %63, %64 : vector<16x128xi1>, vector<16x128xf32>
    %66 = arith.addf %58, %65 : vector<16x128xf32>
    %c0_17 = arith.constant 0 : index
    %c0_18 = arith.constant 0 : index
    %67 = vector.load %arg2[%c0_17, %c0_18] : memref<128x384xf32, #tpu.memory_space<vmem>>, vector<128x384xf32>
    %cst_19 = arith.constant dense<0.000000e+00> : vector<16x384xf32>
    %68 = tpu.matmul %66, %67, %cst_19 {dimension_numbers = #tpu.dot_dimension_numbers<[1], [0], [0], [1], [0, 0, 1, 1], [], []>} : vector<16x128xf32>, vector<128x384xf32>, vector<16x384xf32> -> vector<16x384xf32>
    %c0_20 = arith.constant 0 : index
    %c0_21 = arith.constant 0 : index
    %69 = vector.load %arg3[%c0_20, %c0_21] : memref<384x256xf32, #tpu.memory_space<vmem>>, vector<384x256xf32>
    %cst_22 = arith.constant dense<0.000000e+00> : vector<16x256xf32>
    %70 = tpu.matmul %68, %69, %cst_22 {dimension_numbers = #tpu.dot_dimension_numbers<[1], [0], [0], [1], [0, 0, 1, 1], [], []>} : vector<16x384xf32>, vector<384x256xf32>, vector<16x256xf32> -> vector<16x256xf32>
    %c0_23 = arith.constant 0 : index
    %c0_24 = arith.constant 0 : index
    %71 = vector.load %arg4[%c0_23, %c0_24] : memref<1x256xf32, #tpu.memory_space<vmem>>, vector<1x256xf32>
    %72 = vector.broadcast %71 : vector<1x256xf32> to vector<16x256xf32>
    %73 = arith.addf %70, %72 : vector<16x256xf32>
    %cst_25 = arith.constant 0.000000e+00 : f32
    %74 = vector.broadcast %cst_25 : f32 to vector<16x256xf32>
    %75 = arith.maximumf %73, %74 : vector<16x256xf32>
    %c0_26 = arith.constant 0 : index
    %c0_27 = arith.constant 0 : index
    %76 = vector.load %arg5[%c0_26, %c0_27] : memref<256x256xf32, #tpu.memory_space<vmem>>, vector<256x256xf32>
    %cst_28 = arith.constant dense<0.000000e+00> : vector<16x256xf32>
    %77 = tpu.matmul %75, %76, %cst_28 {dimension_numbers = #tpu.dot_dimension_numbers<[1], [0], [0], [1], [0, 0, 1, 1], [], []>} : vector<16x256xf32>, vector<256x256xf32>, vector<16x256xf32> -> vector<16x256xf32>
    %c0_29 = arith.constant 0 : index
    %c0_30 = arith.constant 0 : index
    %78 = vector.load %arg6[%c0_29, %c0_30] : memref<1x256xf32, #tpu.memory_space<vmem>>, vector<1x256xf32>
    %79 = vector.broadcast %78 : vector<1x256xf32> to vector<16x256xf32>
    %80 = arith.addf %77, %79 : vector<16x256xf32>
    %cst_31 = arith.constant 0.000000e+00 : f32
    %81 = vector.broadcast %cst_31 : f32 to vector<16x256xf32>
    %82 = arith.maximumf %80, %81 : vector<16x256xf32>
    %c0_32 = arith.constant 0 : index
    %c0_33 = arith.constant 0 : index
    %83 = vector.load %arg7[%c0_32, %c0_33] : memref<256x128xf32, #tpu.memory_space<vmem>>, vector<256x128xf32>
    %cst_34 = arith.constant dense<0.000000e+00> : vector<16x128xf32>
    %84 = tpu.matmul %82, %83, %cst_34 {dimension_numbers = #tpu.dot_dimension_numbers<[1], [0], [0], [1], [0, 0, 1, 1], [], []>} : vector<16x256xf32>, vector<256x128xf32>, vector<16x128xf32> -> vector<16x128xf32>
    %c0_35 = arith.constant 0 : index
    %c0_36 = arith.constant 0 : index
    %85 = vector.load %arg8[%c0_35, %c0_36] : memref<1x128xf32, #tpu.memory_space<vmem>>, vector<1x128xf32>
    %86 = vector.broadcast %85 : vector<1x128xf32> to vector<16x128xf32>
    %87 = arith.addf %84, %86 : vector<16x128xf32>
    %c0_37 = arith.constant 0 : index
    %c0_38 = arith.constant 0 : index
    %88 = vector.load %arg9[%c0_37, %c0_38] : memref<16x128xf32, #tpu.memory_space<vmem>>, vector<16x128xf32>
    tpu.vector_store %arg9[%c0_37, %c0_38], %87 {strides = array<i32>} : memref<16x128xf32, #tpu.memory_space<vmem>>, vector<16x128xf32>,
    return
  }
  func.func @transform_0(%arg0: i32) -> (i32, i32) {
    %c0_i32 = arith.constant 0 : i32
    %c0_i32_0 = arith.constant 0 : i32
    return %arg0, %c0_i32 : i32, i32
  }
  func.func @transform_1(%arg0: i32) -> (i32, i32) {
    %c0_i32 = arith.constant 0 : i32
    %c0_i32_0 = arith.constant 0 : i32
    %c0_i32_1 = arith.constant 0 : i32
    return %c0_i32, %c0_i32_0 : i32, i32
  }
  func.func @transform_2(%arg0: i32) -> (i32, i32) {
    %c0_i32 = arith.constant 0 : i32
    %c0_i32_0 = arith.constant 0 : i32
    %c0_i32_1 = arith.constant 0 : i32
    return %c0_i32, %c0_i32_0 : i32, i32
  }
  func.func @transform_3(%arg0: i32) -> (i32, i32) {
    %c0_i32 = arith.constant 0 : i32
    %c0_i32_0 = arith.constant 0 : i32
    %c0_i32_1 = arith.constant 0 : i32
    return %c0_i32, %c0_i32_0 : i32, i32
  }
  func.func @transform_4(%arg0: i32) -> (i32, i32) {
    %c0_i32 = arith.constant 0 : i32
    %c0_i32_0 = arith.constant 0 : i32
    %c0_i32_1 = arith.constant 0 : i32
    return %c0_i32, %c0_i32_0 : i32, i32
  }
  func.func @transform_5(%arg0: i32) -> (i32, i32) {
    %c0_i32 = arith.constant 0 : i32
    %c0_i32_0 = arith.constant 0 : i32
    %c0_i32_1 = arith.constant 0 : i32
    return %c0_i32, %c0_i32_0 : i32, i32
  }
  func.func @transform_6(%arg0: i32) -> (i32, i32) {
    %c0_i32 = arith.constant 0 : i32
    %c0_i32_0 = arith.constant 0 : i32
    %c0_i32_1 = arith.constant 0 : i32
    return %c0_i32, %c0_i32_0 : i32, i32
  }
  func.func @transform_7(%arg0: i32) -> (i32, i32) {
    %c0_i32 = arith.constant 0 : i32
    %c0_i32_0 = arith.constant 0 : i32
    %c0_i32_1 = arith.constant 0 : i32
    return %c0_i32, %c0_i32_0 : i32, i32
  }
  func.func @transform_8(%arg0: i32) -> (i32, i32) {
    %c0_i32 = arith.constant 0 : i32
    %c0_i32_0 = arith.constant 0 : i32
    return %arg0, %c0_i32 : i32, i32
  }
}

</mosaic_0001>

<llo_original>
// kernel: tpu_custom_call.1
$region0: #{tpu_custom_call.1}
  #allocation0 [shape = 'u32[]', space=smem, size = 0x4, offset = 0x4, fixed_abs, tag = 'smem constant byte address 0x4 - core index']
  #allocation1 [shape = 'u32[144,128]{1,0:T(1,128)}', space=vmem, size = 0x12000, scoped, tag = 'internal scratch']
  %s0 = inlined_call_operand.vmem [shape: s32[16,8], index: 0, kind: input, shape index: {}]
  %s1 = inlined_call_operand.hbm [shape: f32[128,384], index: 1, kind: input, shape index: {}]
  %s2 = inlined_call_operand.hbm [shape: f32[384,256], index: 2, kind: input, shape index: {}]
  %s3 = inlined_call_operand.vmem [shape: f32[1,256], index: 3, kind: input, shape index: {}]
  %s4 = inlined_call_operand.hbm [shape: f32[256,256], index: 4, kind: input, shape index: {}]
  %s5 = inlined_call_operand.vmem [shape: f32[1,256], index: 5, kind: input, shape index: {}]
  %s6 = inlined_call_operand.hbm [shape: f32[256,128], index: 6, kind: input, shape index: {}]
  %s7 = inlined_call_operand.vmem [shape: f32[1,128], index: 7, kind: input, shape index: {}]
  %s8 = inlined_call_operand.hbm [shape: f32[16,128], index: 8, kind: output, shape index: {}]
  %s9 = sld [smem:[#allocation0]]
  $region58: #{tpu_custom_call.1} parent=0
    _
  %s11 = ssub.s32 1, %s9
  %s12 = scalar_select 0, %s11, %s9
  $region1: #{tpu_custom_call.1} parent=0
    #allocation2 [shape = 'u8[196608]{0}', space=vmem, size = 0x30000, scoped, tag = 'input window, operand 1, single buffered']
    #allocation3 [shape = 's32[1]{0}', space=sflag, size = 0x4, scoped, tag = 'scoped memory for tpu_custom_call.1']
    #allocation4 [shape = 's32[1]{0}', space=sflag, size = 0x4, scoped, tag = 'scoped memory for tpu_custom_call.1']
    #allocation5 [shape = 'u8[393216]{0}', space=vmem, size = 0x60000, scoped, tag = 'input window, operand 2, single buffered']
    #allocation6 [shape = 's32[1]{0}', space=sflag, size = 0x4, scoped, tag = 'scoped memory for tpu_custom_call.1']
    #allocation7 [shape = 'u8[262144]{0}', space=vmem, size = 0x40000, scoped, tag = 'input window, operand 4, single buffered']
    #allocation8 [shape = 'u8[131072]{0}', space=vmem, size = 0x20000, scoped, tag = 'input window, operand 6, single buffered']
    #allocation9 [shape = 's32[1]{0}', space=sflag, size = 0x4, scoped, tag = 'scoped memory for tpu_custom_call.1']
    #allocation10 [shape = 'u8[8192]{0}', space=vmem, size = 0x2000, scoped, tag = 'output window, operand 0, single buffered']
    %13 = vsyncpa [#allocation3], 0
    %14 = vsyncpa [#allocation6], 0
    %15 = vsyncpa [#allocation9], 0
    %16 = vsyncpa [#allocation4], 0
    // Predicated region
    $region2: #{tpu_custom_call.1} parent=1 // pred_check
      _
    $region3: #{tpu_custom_call.1} parent=1 // pred_check_branch
      %18 = sbr.rel (0) target = $region5
    $region4: #{tpu_custom_call.1} parent=1 // pred_region
      _
    $region5: #{tpu_custom_call.1} parent=1 // pred_fallthru
      _
    // Predicated region
    $region6: #{tpu_custom_call.1} parent=1 // pred_check
      _
    $region7: #{tpu_custom_call.1} parent=1 // pred_check_branch
      %20 = sbr.rel (0) target = $region9
    $region8: #{tpu_custom_call.1} parent=1 // pred_region
      %s22 = ssub.s32 6144, 6144
      %23 = vsyncadd [#allocation3], %s22
      %s24 = sshll.u32 [#allocation2], 4
      %s25 = int_to_ptr.vmem [resolvable:$true] %s24
      %30 = dma.hbm_to_vmem [thread:$0]  %s1, 6144, %s25, [#allocation3], 384, 384, 24
    $region9: #{tpu_custom_call.1} parent=1 // pred_fallthru
      _
    // Predicated region
    $region10: #{tpu_custom_call.1} parent=1 // pred_check
      _
    $region11: #{tpu_custom_call.1} parent=1 // pred_check_branch
      %32 = sbr.rel (0) target = $region13
    $region12: #{tpu_custom_call.1} parent=1 // pred_region
      %s34 = ssub.s32 12288, 12288
      %35 = vsyncadd [#allocation6], %s34
      %s36 = sshll.u32 [#allocation5], 4
      %s37 = int_to_ptr.vmem [resolvable:$true] %s36
      %42 = dma.hbm_to_vmem [thread:$0]  %s2, 12288, %s37, [#allocation6], 256, 256, 16
    $region13: #{tpu_custom_call.1} parent=1 // pred_fallthru
      _
    // Predicated region
    $region14: #{tpu_custom_call.1} parent=1 // pred_check
      _
    $region15: #{tpu_custom_call.1} parent=1 // pred_check_branch
      %44 = sbr.rel (0) target = $region17
    $region16: #{tpu_custom_call.1} parent=1 // pred_region
      _
    $region17: #{tpu_custom_call.1} parent=1 // pred_fallthru
      _
    // Predicated region
    $region18: #{tpu_custom_call.1} parent=1 // pred_check
      _
    $region19: #{tpu_custom_call.1} parent=1 // pred_check_branch
      %46 = sbr.rel (0) target = $region21
    $region20: #{tpu_custom_call.1} parent=1 // pred_region
      %s48 = ssub.s32 8192, 8192
      %49 = vsyncadd [#allocation6], %s48
      %s50 = sshll.u32 [#allocation7], 4
      %s51 = int_to_ptr.vmem [resolvable:$true] %s50
      %56 = dma.hbm_to_vmem [thread:$0]  %s4, 8192, %s51, [#allocation6], 256, 256, 16
    $region21: #{tpu_custom_call.1} parent=1 // pred_fallthru
      _
    // Predicated region
    $region22: #{tpu_custom_call.1} parent=1 // pred_check
      _
    $region23: #{tpu_custom_call.1} parent=1 // pred_check_branch
      %58 = sbr.rel (0) target = $region25
    $region24: #{tpu_custom_call.1} parent=1 // pred_region
      _
    $region25: #{tpu_custom_call.1} parent=1 // pred_fallthru
      _
    // Predicated region
    $region26: #{tpu_custom_call.1} parent=1 // pred_check
      _
    $region27: #{tpu_custom_call.1} parent=1 // pred_check_branch
      %60 = sbr.rel (0) target = $region29
    $region28: #{tpu_custom_call.1} parent=1 // pred_region
      %s62 = ssub.s32 4096, 4096
      %63 = vsyncadd [#allocation9], %s62
      %s64 = sshll.u32 [#allocation8], 4
      %s65 = int_to_ptr.vmem [resolvable:$true] %s64
      %70 = dma.hbm_to_vmem [thread:$0]  %s6, 4096, %s65, [#allocation9], 128, 128, 8
    $region29: #{tpu_custom_call.1} parent=1 // pred_fallthru
      _
    // Predicated region
    $region30: #{tpu_custom_call.1} parent=1 // pred_check
      _
    $region31: #{tpu_custom_call.1} parent=1 // pred_check_branch
      %72 = sbr.rel (0) target = $region33
    $region32: #{tpu_custom_call.1} parent=1 // pred_region
      _
    $region33: #{tpu_custom_call.1} parent=1 // pred_fallthru
      _
    // Predicated region
    $region34: #{tpu_custom_call.1} parent=1 // pred_check
      _
    $region35: #{tpu_custom_call.1} parent=1 // pred_check_branch
      %74 = sbr.rel (0) target = $region37
    $region36: #{tpu_custom_call.1} parent=1 // pred_region
      %75 = dma.done [#allocation3], 6144
    $region37: #{tpu_custom_call.1} parent=1 // pred_fallthru
      _
    // Predicated region
    $region38: #{tpu_custom_call.1} parent=1 // pred_check
      _
    $region39: #{tpu_custom_call.1} parent=1 // pred_check_branch
      %77 = sbr.rel (0) target = $region41
    $region40: #{tpu_custom_call.1} parent=1 // pred_region
      %78 = dma.done [#allocation6], 12288
    $region41: #{tpu_custom_call.1} parent=1 // pred_fallthru
      _
    // Predicated region
    $region42: #{tpu_custom_call.1} parent=1 // pred_check
      _
    $region43: #{tpu_custom_call.1} parent=1 // pred_check_branch
      %80 = sbr.rel (0) target = $region45
    $region44: #{tpu_custom_call.1} parent=1 // pred_region
      %81 = dma.done [#allocation6], 8192
    $region45: #{tpu_custom_call.1} parent=1 // pred_fallthru
      _
    // Predicated region
    $region46: #{tpu_custom_call.1} parent=1 // pred_check
      _
    $region47: #{tpu_custom_call.1} parent=1 // pred_check_branch
      %83 = sbr.rel (0) target = $region49
    $region48: #{tpu_custom_call.1} parent=1 // pred_region
      %84 = dma.done [#allocation9], 4096
    $region49: #{tpu_custom_call.1} parent=1 // pred_fallthru
      _
    %v85 = vld [vmem:[%s0] sm:$0xff]
    %v86 = vld [vmem:[%s0 + $0x8] sm:$0xff]
    %v87 = vlaneseq
    %v88 = vand.u32 %v87, 127
    %89 = vset.pattern.permute.xlu0 0
    %90 = vperm.xlu0 %89, %v85
    %v91 = vpop.permute.xlu0 %90
    %92 = vset.pattern.permute.xlu0 0
    %93 = vperm.xlu0 %92, %v86
    %v94 = vpop.permute.xlu0 %93
    %vm95 = vcmp.eq.s32.totalorder %v91, %v88
    %vm96 = vcmp.eq.s32.totalorder %v94, %v88
    %v97 = vsel %vm95, 0.125, 0.0
    %v98 = vsel %vm96, 0.125, 0.0
    %v99 = vadd.f32 %v97, 0.0
    %v100 = vadd.f32 %v98, 0.0
    %101 = vset.pattern.permute.xlu0 1
    %102 = vperm.xlu0 %101, %v85
    %v103 = vpop.permute.xlu0 %102
    %104 = vset.pattern.permute.xlu0 1
    %105 = vperm.xlu0 %104, %v86
    %v106 = vpop.permute.xlu0 %105
    %vm107 = vcmp.eq.s32.totalorder %v103, %v88
    %vm108 = vcmp.eq.s32.totalorder %v106, %v88
    %v109 = vsel %vm107, 0.125, 0.0
    %v110 = vsel %vm108, 0.125, 0.0
    %v111 = vadd.f32 %v99, %v109
    %v112 = vadd.f32 %v100, %v110
    %113 = vset.pattern.permute.xlu0 2
    %114 = vperm.xlu0 %113, %v85
    %v115 = vpop.permute.xlu0 %114
    %116 = vset.pattern.permute.xlu0 2
    %117 = vperm.xlu0 %116, %v86
    %v118 = vpop.permute.xlu0 %117
    %vm119 = vcmp.eq.s32.totalorder %v115, %v88
    %vm120 = vcmp.eq.s32.totalorder %v118, %v88
    %v121 = vsel %vm119, 0.125, 0.0
    %v122 = vsel %vm120, 0.125, 0.0
    %v123 = vadd.f32 %v111, %v121
    %v124 = vadd.f32 %v112, %v122
    %125 = vset.pattern.permute.xlu0 3
    %126 = vperm.xlu0 %125, %v85
    %v127 = vpop.permute.xlu0 %126
    %128 = vset.pattern.permute.xlu0 3
    %129 = vperm.xlu0 %128, %v86
    %v130 = vpop.permute.xlu0 %129
    %vm131 = vcmp.eq.s32.totalorder %v127, %v88
    %vm132 = vcmp.eq.s32.totalorder %v130, %v88
    %v133 = vsel %vm131, 0.125, 0.0
    %v134 = vsel %vm132, 0.125, 0.0
    %v135 = vadd.f32 %v123, %v133
    %v136 = vadd.f32 %v124, %v134
    %137 = vset.pattern.permute.xlu0 4
    %138 = vperm.xlu0 %137, %v85
    %v139 = vpop.permute.xlu0 %138
    %140 = vset.pattern.permute.xlu0 4
    %141 = vperm.xlu0 %140, %v86
    %v142 = vpop.permute.xlu0 %141
    %vm143 = vcmp.eq.s32.totalorder %v139, %v88
    %vm144 = vcmp.eq.s32.totalorder %v142, %v88
    %v145 = vsel %vm143, 0.125, 0.0
    %v146 = vsel %vm144, 0.125, 0.0
    %v147 = vadd.f32 %v135, %v145
    %v148 = vadd.f32 %v136, %v146
    %149 = vset.pattern.permute.xlu0 5
    %150 = vperm.xlu0 %149, %v85
    %v151 = vpop.permute.xlu0 %150
    %152 = vset.pattern.permute.xlu0 5
    %153 = vperm.xlu0 %152, %v86
    %v154 = vpop.permute.xlu0 %153
    %vm155 = vcmp.eq.s32.totalorder %v151, %v88
    %vm156 = vcmp.eq.s32.totalorder %v154, %v88
    %v157 = vsel %vm155, 0.125, 0.0
    %v158 = vsel %vm156, 0.125, 0.0
    %v159 = vadd.f32 %v147, %v157
    %v160 = vadd.f32 %v148, %v158
    %161 = vset.pattern.permute.xlu0 6
    %162 = vperm.xlu0 %161, %v85
    %v163 = vpop.permute.xlu0 %162
    %164 = vset.pattern.permute.xlu0 6
    %165 = vperm.xlu0 %164, %v86
    %v166 = vpop.permute.xlu0 %165
    %vm167 = vcmp.eq.s32.totalorder %v163, %v88
    %vm168 = vcmp.eq.s32.totalorder %v166, %v88
    %v169 = vsel %vm167, 0.125, 0.0
    %v170 = vsel %vm168, 0.125, 0.0
    %v171 = vadd.f32 %v159, %v169
    %v172 = vadd.f32 %v160, %v170
    %173 = vset.pattern.permute.xlu0 7
    %174 = vperm.xlu0 %173, %v85
    %v175 = vpop.permute.xlu0 %174
    %176 = vset.pattern.permute.xlu0 7
    %177 = vperm.xlu0 %176, %v86
    %v178 = vpop.permute.xlu0 %177
    %vm179 = vcmp.eq.s32.totalorder %v175, %v88
    %vm180 = vcmp.eq.s32.totalorder %v178, %v88
    %v181 = vsel %vm179, 0.125, 0.0
    %v182 = vsel %vm180, 0.125, 0.0
    %v183 = vadd.f32 %v171, %v181
    %v184 = vadd.f32 %v172, %v182
    %v185 = vld [vmem:[#allocation2] sm:$0xff]
    %v186 = vld [vmem:[#allocation2 + $0x8] sm:$0xff]
    %v187 = vld [vmem:[#allocation2 + $0x10] sm:$0xff]
    %v188 = vld [vmem:[#allocation2 + $0x18] sm:$0xff]
    %v189 = vld [vmem:[#allocation2 + $0x20] sm:$0xff]
    %v190 = vld [vmem:[#allocation2 + $0x28] sm:$0xff]
    %v191 = vld [vmem:[#allocation2 + $0x30] sm:$0xff]
    %v192 = vld [vmem:[#allocation2 + $0x38] sm:$0xff]
    %v193 = vld [vmem:[#allocation2 + $0x40] sm:$0xff]
    %v194 = vld [vmem:[#allocation2 + $0x48] sm:$0xff]
    %v195 = vld [vmem:[#allocation2 + $0x50] sm:$0xff]
    %v196 = vld [vmem:[#allocation2 + $0x58] sm:$0xff]
    %v197 = vld [vmem:[#allocation2 + $0x60] sm:$0xff]
    %v198 = vld [vmem:[#allocation2 + $0x68] sm:$0xff]
    %v199 = vld [vmem:[#allocation2 + $0x70] sm:$0xff]
    %v200 = vld [vmem:[#allocation2 + $0x78] sm:$0xff]
    %v201 = vld [vmem:[#allocation2 + $0x80] sm:$0xff]
    %v202 = vld [vmem:[#allocation2 + $0x88] sm:$0xff]
    %v203 = vld [vmem:[#allocation2 + $0x90] sm:$0xff]
    %v204 = vld [vmem:[#allocation2 + $0x98] sm:$0xff]
    %v205 = vld [vmem:[#allocation2 + $0xa0] sm:$0xff]
    %v206 = vld [vmem:[#allocation2 + $0xa8] sm:$0xff]
    %v207 = vld [vmem:[#allocation2 + $0xb0] sm:$0xff]
    %v208 = vld [vmem:[#allocation2 + $0xb8] sm:$0xff]
    %v209 = vld [vmem:[#allocation2 + $0xc0] sm:$0xff]
    %v210 = vld [vmem:[#allocation2 + $0xc8] sm:$0xff]
    %v211 = vld [vmem:[#allocation2 + $0xd0] sm:$0xff]
    %v212 = vld [vmem:[#allocation2 + $0xd8] sm:$0xff]
    %v213 = vld [vmem:[#allocation2 + $0xe0] sm:$0xff]
    %v214 = vld [vmem:[#allocation2 + $0xe8] sm:$0xff]
    %v215 = vld [vmem:[#allocation2 + $0xf0] sm:$0xff]
    %v216 = vld [vmem:[#allocation2 + $0xf8] sm:$0xff]
    %v217 = vld [vmem:[#allocation2 + $0x100] sm:$0xff]
    %v218 = vld [vmem:[#allocation2 + $0x108] sm:$0xff]
    %v219 = vld [vmem:[#allocation2 + $0x110] sm:$0xff]
    %v220 = vld [vmem:[#allocation2 + $0x118] sm:$0xff]
    %v221 = vld [vmem:[#allocation2 + $0x120] sm:$0xff]
    %v222 = vld [vmem:[#allocation2 + $0x128] sm:$0xff]
    %v223 = vld [vmem:[#allocation2 + $0x130] sm:$0xff]
    %v224 = vld [vmem:[#allocation2 + $0x138] sm:$0xff]
    %v225 = vld [vmem:[#allocation2 + $0x140] sm:$0xff]
    %v226 = vld [vmem:[#allocation2 + $0x148] sm:$0xff]
    %v227 = vld [vmem:[#allocation2 + $0x150] sm:$0xff]
    %v228 = vld [vmem:[#allocation2 + $0x158] sm:$0xff]
    %v229 = vld [vmem:[#allocation2 + $0x160] sm:$0xff]
    %v230 = vld [vmem:[#allocation2 + $0x168] sm:$0xff]
    %v231 = vld [vmem:[#allocation2 + $0x170] sm:$0xff]
    %v232 = vld [vmem:[#allocation2 + $0x178] sm:$0xff]
    %233 = vmatprep.subr.mxu0 %v186
    %234 = vmatpush1.msra.mxu0 %v185
    %235 = vmatprep.subr.mxu0 %v189
    %236 = vmatpush1.msra.mxu0 %v188
    %237 = vmatprep.subr.mxu0 %v192
    %238 = vmatpush1.msra.mxu0 %v191
    %239 = vmatprep.subr.mxu0 %v195
    %240 = vmatpush1.msra.mxu0 %v194
    %241 = vmatprep.subr.mxu0 %v198
    %242 = vmatpush1.msra.mxu0 %v197
    %243 = vmatprep.subr.mxu0 %v201
    %244 = vmatpush1.msra.mxu0 %v200
    %245 = vmatprep.subr.mxu0 %v204
    %246 = vmatpush1.msra.mxu0 %v203
    %247 = vmatprep.subr.mxu0 %v207
    %248 = vmatpush1.msra.mxu0 %v206
    %249 = vmatprep.subr.mxu0 %v210
    %250 = vmatpush1.msra.mxu0 %v209
    %251 = vmatprep.subr.mxu0 %v213
    %252 = vmatpush1.msra.mxu0 %v212
    %253 = vmatprep.subr.mxu0 %v216
    %254 = vmatpush1.msra.mxu0 %v215
    %255 = vmatprep.subr.mxu0 %v219
    %256 = vmatpush1.msra.mxu0 %v218
    %257 = vmatprep.subr.mxu0 %v222
    %258 = vmatpush1.msra.mxu0 %v221
    %259 = vmatprep.subr.mxu0 %v225
    %260 = vmatpush1.msra.mxu0 %v224
    %261 = vmatprep.subr.mxu0 %v228
    %262 = vmatpush1.msra.mxu0 %v227
    %263 = vmatprep.subr.mxu0 %v231
    %264 = vmatpush1.msra.mxu0 %v230
    %265 = vmatprep.subr.mxu0 0.0
    %266 = vmatpush1.msra.mxu0 0.0
    %267 = vmatprep.subr.mxu0 0.0
    %268 = vmatpush1.msra.mxu0 0.0
    %269 = vmatprep.subr.mxu0 0.0
    %270 = vmatpush1.msra.mxu0 0.0
    %271 = vmatprep.subr.mxu0 0.0
    %272 = vmatpush1.msra.mxu0 0.0
    %273 = vmatprep.subr.mxu0 0.0
    %274 = vmatpush1.msra.mxu0 0.0
    %275 = vmatprep.subr.mxu0 0.0
    %276 = vmatpush1.msra.mxu0 0.0
    %277 = vmatprep.subr.mxu0 0.0
    %278 = vmatpush1.msra.mxu0 0.0
    %279 = vmatprep.subr.mxu0 0.0
    %280 = vmatpush1.msra.mxu0 0.0
    %281 = vmatprep.subr.mxu0 0.0
    %282 = vmatpush1.msra.mxu0 0.0
    %283 = vmatprep.subr.mxu0 0.0
    %284 = vmatpush1.msra.mxu0 0.0
    %285 = vmatprep.subr.mxu0 0.0
    %286 = vmatpush1.msra.mxu0 0.0
    %287 = vmatprep.subr.mxu0 0.0
    %288 = vmatpush1.msra.mxu0 0.0
    %289 = vmatprep.subr.mxu0 0.0
    %290 = vmatpush1.msra.mxu0 0.0
    %291 = vmatprep.subr.mxu0 0.0
    %292 = vmatpush1.msra.mxu0 0.0
    %293 = vmatprep.subr.mxu0 0.0
    %294 = vmatpush1.msra.mxu0 0.0
    %295 = vmatprep.subr.mxu0 0.0
    %296 = vmatpush1.msra.mxu0 0.0
    %297 = vmatprep.mubr.f32.mxu0 0.0
    %298 = vmatmul.mubr.f32.gmra.mrb[0].mxu0 %v183
    %v299 = vpop.f32.mrb[0].mxu0
    %v300 = vadd.f32 0.0, %v299
    %v301 = vpop.f32.mrb[0].mxu0
    %v302 = vadd.f32 0.0, %v301
    %303 = vmatprep.mubr.f32.mxu0 0.0
    %304 = vmatmul.mubr.f32.gmra.mrb[0].mxu0 %v184
    %v305 = vpop.f32.mrb[0].mxu0
    %v306 = vadd.f32 0.0, %v305
    %v307 = vpop.f32.mrb[0].mxu0
    %v308 = vadd.f32 0.0, %v307
    %309 = vdwg.mxu0
    %310 = vmatprep.subr.mxu0 0.0
    %311 = vmatpush1.msra.mxu0 %v187
    %312 = vmatprep.subr.mxu0 0.0
    %313 = vmatpush1.msra.mxu0 %v190
    %314 = vmatprep.subr.mxu0 0.0
    %315 = vmatpush1.msra.mxu0 %v193
    %316 = vmatprep.subr.mxu0 0.0
    %317 = vmatpush1.msra.mxu0 %v196
    %318 = vmatprep.subr.mxu0 0.0
    %319 = vmatpush1.msra.mxu0 %v199
    %320 = vmatprep.subr.mxu0 0.0
    %321 = vmatpush1.msra.mxu0 %v202
    %322 = vmatprep.subr.mxu0 0.0
    %323 = vmatpush1.msra.mxu0 %v205
    %324 = vmatprep.subr.mxu0 0.0
    %325 = vmatpush1.msra.mxu0 %v208
    %326 = vmatprep.subr.mxu0 0.0
    %327 = vmatpush1.msra.mxu0 %v211
    %328 = vmatprep.subr.mxu0 0.0
    %329 = vmatpush1.msra.mxu0 %v214
    %330 = vmatprep.subr.mxu0 0.0
    %331 = vmatpush1.msra.mxu0 %v217
    %332 = vmatprep.subr.mxu0 0.0
    %333 = vmatpush1.msra.mxu0 %v220
    %334 = vmatprep.subr.mxu0 0.0
    %335 = vmatpush1.msra.mxu0 %v223
    %336 = vmatprep.subr.mxu0 0.0
    %337 = vmatpush1.msra.mxu0 %v226
    %338 = vmatprep.subr.mxu0 0.0
    %339 = vmatpush1.msra.mxu0 %v229
    %340 = vmatprep.subr.mxu0 0.0
    %341 = vmatpush1.msra.mxu0 %v232
    %342 = vmatprep.subr.mxu0 0.0
    %343 = vmatpush1.msra.mxu0 0.0
    %344 = vmatprep.subr.mxu0 0.0
    %345 = vmatpush1.msra.mxu0 0.0
    %346 = vmatprep.subr.mxu0 0.0
    %347 = vmatpush1.msra.mxu0 0.0
    %348 = vmatprep.subr.mxu0 0.0
    %349 = vmatpush1.msra.mxu0 0.0
    %350 = vmatprep.subr.mxu0 0.0
    %351 = vmatpush1.msra.mxu0 0.0
    %352 = vmatprep.subr.mxu0 0.0
    %353 = vmatpush1.msra.mxu0 0.0
    %354 = vmatprep.subr.mxu0 0.0
    %355 = vmatpush1.msra.mxu0 0.0
    %356 = vmatprep.subr.mxu0 0.0
    %357 = vmatpush1.msra.mxu0 0.0
    %358 = vmatprep.subr.mxu0 0.0
    %359 = vmatpush1.msra.mxu0 0.0
    %360 = vmatprep.subr.mxu0 0.0
    %361 = vmatpush1.msra.mxu0 0.0
    %362 = vmatprep.subr.mxu0 0.0
    %363 = vmatpush1.msra.mxu0 0.0
    %364 = vmatprep.subr.mxu0 0.0
    %365 = vmatpush1.msra.mxu0 0.0
    %366 = vmatprep.subr.mxu0 0.0
    %367 = vmatpush1.msra.mxu0 0.0
    %368 = vmatprep.subr.mxu0 0.0
    %369 = vmatpush1.msra.mxu0 0.0
    %370 = vmatprep.subr.mxu0 0.0
    %371 = vmatpush1.msra.mxu0 0.0
    %372 = vmatprep.subr.mxu0 0.0
    %373 = vmatpush1.msra.mxu0 0.0
    %374 = vmatprep.mubr.f32.mxu0 0.0
    %375 = vmatmul.mubr.f32.gmra.mrb[0].mxu0 %v183
    %v376 = vpop.f32.mrb[0].mxu0
    %v377 = vadd.f32 0.0, %v376
    %v378 = vpop.f32.mrb[0].mxu0
    %379 = vmatprep.mubr.f32.mxu0 0.0
    %380 = vmatmul.mubr.f32.gmra.mrb[0].mxu0 %v184
    %v381 = vpop.f32.mrb[0].mxu0
    %v382 = vadd.f32 0.0, %v381
    %v383 = vpop.f32.mrb[0].mxu0
    %384 = vdwg.mxu0
    %v385 = vld [vmem:[#allocation5] sm:$0xff]
    %v386 = vld [vmem:[#allocation5 + $0x8] sm:$0xff]
    %v387 = vld [vmem:[#allocation5 + $0x10] sm:$0xff]
    %v388 = vld [vmem:[#allocation5 + $0x18] sm:$0xff]
    %v389 = vld [vmem:[#allocation5 + $0x20] sm:$0xff]
    %v390 = vld [vmem:[#allocation5 + $0x28] sm:$0xff]
    %v391 = vld [vmem:[#allocation5 + $0x30] sm:$0xff]
    %v392 = vld [vmem:[#allocation5 + $0x38] sm:$0xff]
    %v393 = vld [vmem:[#allocation5 + $0x40] sm:$0xff]
    %v394 = vld [vmem:[#allocation5 + $0x48] sm:$0xff]
    %v395 = vld [vmem:[#allocation5 + $0x50] sm:$0xff]
    %v396 = vld [vmem:[#allocation5 + $0x58] sm:$0xff]
    %v397 = vld [vmem:[#allocation5 + $0x60] sm:$0xff]
    %v398 = vld [vmem:[#allocation5 + $0x68] sm:$0xff]
    %v399 = vld [vmem:[#allocation5 + $0x70] sm:$0xff]
    %v400 = vld [vmem:[#allocation5 + $0x78] sm:$0xff]
    %v401 = vld [vmem:[#allocation5 + $0x80] sm:$0xff]
    %v402 = vld [vmem:[#allocation5 + $0x88] sm:$0xff]
    %v403 = vld [vmem:[#allocation5 + $0x90] sm:$0xff]
    %v404 = vld [vmem:[#allocation5 + $0x98] sm:$0xff]
    %v405 = vld [vmem:[#allocation5 + $0xa0] sm:$0xff]
    %v406 = vld [vmem:[#allocation5 + $0xa8] sm:$0xff]
    %v407 = vld [vmem:[#allocation5 + $0xb0] sm:$0xff]
    %v408 = vld [vmem:[#allocation5 + $0xb8] sm:$0xff]
    %v409 = vld [vmem:[#allocation5 + $0xc0] sm:$0xff]
    %v410 = vld [vmem:[#allocation5 + $0xc8] sm:$0xff]
    %v411 = vld [vmem:[#allocation5 + $0xd0] sm:$0xff]
    %v412 = vld [vmem:[#allocation5 + $0xd8] sm:$0xff]
    %v413 = vld [vmem:[#allocation5 + $0xe0] sm:$0xff]
    %v414 = vld [vmem:[#allocation5 + $0xe8] sm:$0xff]
    %v415 = vld [vmem:[#allocation5 + $0xf0] sm:$0xff]
    %v416 = vld [vmem:[#allocation5 + $0xf8] sm:$0xff]
    %v417 = vld [vmem:[#allocation5 + $0x100] sm:$0xff]
    %v418 = vld [vmem:[#allocation5 + $0x108] sm:$0xff]
    %v419 = vld [vmem:[#allocation5 + $0x110] sm:$0xff]
    %v420 = vld [vmem:[#allocation5 + $0x118] sm:$0xff]
    %v421 = vld [vmem:[#allocation5 + $0x120] sm:$0xff]
    %v422 = vld [vmem:[#allocation5 + $0x128] sm:$0xff]
    %v423 = vld [vmem:[#allocation5 + $0x130] sm:$0xff]
    %v424 = vld [vmem:[#allocation5 + $0x138] sm:$0xff]
    %v425 = vld [vmem:[#allocation5 + $0x140] sm:$0xff]
    %v426 = vld [vmem:[#allocation5 + $0x148] sm:$0xff]
    %v427 = vld [vmem:[#allocation5 + $0x150] sm:$0xff]
    %v428 = vld [vmem:[#allocation5 + $0x158] sm:$0xff]
    %v429 = vld [vmem:[#allocation5 + $0x160] sm:$0xff]
    %v430 = vld [vmem:[#allocation5 + $0x168] sm:$0xff]
    %v431 = vld [vmem:[#allocation5 + $0x170] sm:$0xff]
    %v432 = vld [vmem:[#allocation5 + $0x178] sm:$0xff]
    %v433 = vld [vmem:[#allocation5 + $0x180] sm:$0xff]
    %v434 = vld [vmem:[#allocation5 + $0x188] sm:$0xff]
    %v435 = vld [vmem:[#allocation5 + $0x190] sm:$0xff]
    %v436 = vld [vmem:[#allocation5 + $0x198] sm:$0xff]
    %v437 = vld [vmem:[#allocation5 + $0x1a0] sm:$0xff]
    %v438 = vld [vmem:[#allocation5 + $0x1a8] sm:$0xff]
    %v439 = vld [vmem:[#allocation5 + $0x1b0] sm:$0xff]
    %v440 = vld [vmem:[#allocation5 + $0x1b8] sm:$0xff]
    %v441 = vld [vmem:[#allocation5 + $0x1c0] sm:$0xff]
    %v442 = vld [vmem:[#allocation5 + $0x1c8] sm:$0xff]
    %v443 = vld [vmem:[#allocation5 + $0x1d0] sm:$0xff]
    %v444 = vld [vmem:[#allocation5 + $0x1d8] sm:$0xff]
    %v445 = vld [vmem:[#allocation5 + $0x1e0] sm:$0xff]
    %v446 = vld [vmem:[#allocation5 + $0x1e8] sm:$0xff]
    %v447 = vld [vmem:[#allocation5 + $0x1f0] sm:$0xff]
    %v448 = vld [vmem:[#allocation5 + $0x1f8] sm:$0xff]
    %v449 = vld [vmem:[#allocation5 + $0x200] sm:$0xff]
    %v450 = vld [vmem:[#allocation5 + $0x208] sm:$0xff]
    %v451 = vld [vmem:[#allocation5 + $0x210] sm:$0xff]
    %v452 = vld [vmem:[#allocation5 + $0x218] sm:$0xff]
    %v453 = vld [vmem:[#allocation5 + $0x220] sm:$0xff]
    %v454 = vld [vmem:[#allocation5 + $0x228] sm:$0xff]
    %v455 = vld [vmem:[#allocation5 + $0x230] sm:$0xff]
    %v456 = vld [vmem:[#allocation5 + $0x238] sm:$0xff]
    %v457 = vld [vmem:[#allocation5 + $0x240] sm:$0xff]
    %v458 = vld [vmem:[#allocation5 + $0x248] sm:$0xff]
    %v459 = vld [vmem:[#allocation5 + $0x250] sm:$0xff]
    %v460 = vld [vmem:[#allocation5 + $0x258] sm:$0xff]
    %v461 = vld [vmem:[#allocation5 + $0x260] sm:$0xff]
    %v462 = vld [vmem:[#allocation5 + $0x268] sm:$0xff]
    %v463 = vld [vmem:[#allocation5 + $0x270] sm:$0xff]
    %v464 = vld [vmem:[#allocation5 + $0x278] sm:$0xff]
    %v465 = vld [vmem:[#allocation5 + $0x280] sm:$0xff]
    %v466 = vld [vmem:[#allocation5 + $0x288] sm:$0xff]
    %v467 = vld [vmem:[#allocation5 + $0x290] sm:$0xff]
    %v468 = vld [vmem:[#allocation5 + $0x298] sm:$0xff]
    %v469 = vld [vmem:[#allocation5 + $0x2a0] sm:$0xff]
    %v470 = vld [vmem:[#allocation5 + $0x2a8] sm:$0xff]
    %v471 = vld [vmem:[#allocation5 + $0x2b0] sm:$0xff]
    %v472 = vld [vmem:[#allocation5 + $0x2b8] sm:$0xff]
    %v473 = vld [vmem:[#allocation5 + $0x2c0] sm:$0xff]
    %v474 = vld [vmem:[#allocation5 + $0x2c8] sm:$0xff]
    %v475 = vld [vmem:[#allocation5 + $0x2d0] sm:$0xff]
    %v476 = vld [vmem:[#allocation5 + $0x2d8] sm:$0xff]
    %v477 = vld [vmem:[#allocation5 + $0x2e0] sm:$0xff]
    %v478 = vld [vmem:[#allocation5 + $0x2e8] sm:$0xff]
    %v479 = vld [vmem:[#allocation5 + $0x2f0] sm:$0xff]
    %v480 = vld [vmem:[#allocation5 + $0x2f8] sm:$0xff]
    %v481 = vld [vmem:[%s3] sm:$0x3]
    %v483 = vlaneseq
    %v484 = vshrl.u32 %v483, 7
    %v485 = vsub.s32 0, %v484
    %v486 = vrot.slane %v481, %v485
    %v487 = vlaneseq
    %v488 = vshrl.u32 %v487, 7
    %v489 = vsub.s32 1, %v488
    %v490 = vrot.slane %v481, %v489
    %493 = vmatprep.subr.mxu0 %v386
    %494 = vmatpush1.msra.mxu0 %v385
    %495 = vmatprep.subr.mxu0 %v388
    %496 = vmatpush1.msra.mxu0 %v387
    %497 = vmatprep.subr.mxu0 %v390
    %498 = vmatpush1.msra.mxu0 %v389
    %499 = vmatprep.subr.mxu0 %v392
    %500 = vmatpush1.msra.mxu0 %v391
    %501 = vmatprep.subr.mxu0 %v394
    %502 = vmatpush1.msra.mxu0 %v393
    %503 = vmatprep.subr.mxu0 %v396
    %504 = vmatpush1.msra.mxu0 %v395
    %505 = vmatprep.subr.mxu0 %v398
    %506 = vmatpush1.msra.mxu0 %v397
    %507 = vmatprep.subr.mxu0 %v400
    %508 = vmatpush1.msra.mxu0 %v399
    %509 = vmatprep.subr.mxu0 %v402
    %510 = vmatpush1.msra.mxu0 %v401
    %511 = vmatprep.subr.mxu0 %v404
    %512 = vmatpush1.msra.mxu0 %v403
    %513 = vmatprep.subr.mxu0 %v406
    %514 = vmatpush1.msra.mxu0 %v405
    %515 = vmatprep.subr.mxu0 %v408
    %516 = vmatpush1.msra.mxu0 %v407
    %517 = vmatprep.subr.mxu0 %v410
    %518 = vmatpush1.msra.mxu0 %v409
    %519 = vmatprep.subr.mxu0 %v412
    %520 = vmatpush1.msra.mxu0 %v411
    %521 = vmatprep.subr.mxu0 %v414
    %522 = vmatpush1.msra.mxu0 %v413
    %523 = vmatprep.subr.mxu0 %v416
    %524 = vmatpush1.msra.mxu0 %v415
    %525 = vmatprep.subr.mxu0 %v418
    %526 = vmatpush1.msra.mxu0 %v417
    %527 = vmatprep.subr.mxu0 %v420
    %528 = vmatpush1.msra.mxu0 %v419
    %529 = vmatprep.subr.mxu0 %v422
    %530 = vmatpush1.msra.mxu0 %v421
    %531 = vmatprep.subr.mxu0 %v424
    %532 = vmatpush1.msra.mxu0 %v423
    %533 = vmatprep.subr.mxu0 %v426
    %534 = vmatpush1.msra.mxu0 %v425
    %535 = vmatprep.subr.mxu0 %v428
    %536 = vmatpush1.msra.mxu0 %v427
    %537 = vmatprep.subr.mxu0 %v430
    %538 = vmatpush1.msra.mxu0 %v429
    %539 = vmatprep.subr.mxu0 %v432
    %540 = vmatpush1.msra.mxu0 %v431
    %541 = vmatprep.subr.mxu0 %v434
    %542 = vmatpush1.msra.mxu0 %v433
    %543 = vmatprep.subr.mxu0 %v436
    %544 = vmatpush1.msra.mxu0 %v435
    %545 = vmatprep.subr.mxu0 %v438
    %546 = vmatpush1.msra.mxu0 %v437
    %547 = vmatprep.subr.mxu0 %v440
    %548 = vmatpush1.msra.mxu0 %v439
    %549 = vmatprep.subr.mxu0 %v442
    %550 = vmatpush1.msra.mxu0 %v441
    %551 = vmatprep.subr.mxu0 %v444
    %552 = vmatpush1.msra.mxu0 %v443
    %553 = vmatprep.subr.mxu0 %v446
    %554 = vmatpush1.msra.mxu0 %v445
    %555 = vmatprep.subr.mxu0 %v448
    %556 = vmatpush1.msra.mxu0 %v447
    %557 = vmatprep.mubr.f32.mxu0 %v302
    %558 = vmatmul.mubr.f32.gmra.mrb[0].mxu0 %v300
    %v559 = vpop.f32.mrb[0].mxu0
    %v560 = vadd.f32 %v486, %v559
    %v561 = vpop.f32.mrb[0].mxu0
    %v562 = vadd.f32 %v490, %v561
    %563 = vmatprep.mubr.f32.mxu0 %v308
    %564 = vmatmul.mubr.f32.gmra.mrb[0].mxu0 %v306
    %v565 = vpop.f32.mrb[0].mxu0
    %v566 = vadd.f32 %v486, %v565
    %v567 = vpop.f32.mrb[0].mxu0
    %v568 = vadd.f32 %v490, %v567
    %569 = vdwg.mxu0
    %570 = vmatprep.subr.mxu0 %v450
    %571 = vmatpush1.msra.mxu0 %v449
    %572 = vmatprep.subr.mxu0 %v452
    %573 = vmatpush1.msra.mxu0 %v451
    %574 = vmatprep.subr.mxu0 %v454
    %575 = vmatpush1.msra.mxu0 %v453
    %576 = vmatprep.subr.mxu0 %v456
    %577 = vmatpush1.msra.mxu0 %v455
    %578 = vmatprep.subr.mxu0 %v458
    %579 = vmatpush1.msra.mxu0 %v457
    %580 = vmatprep.subr.mxu0 %v460
    %581 = vmatpush1.msra.mxu0 %v459
    %582 = vmatprep.subr.mxu0 %v462
    %583 = vmatpush1.msra.mxu0 %v461
    %584 = vmatprep.subr.mxu0 %v464
    %585 = vmatpush1.msra.mxu0 %v463
    %586 = vmatprep.subr.mxu0 %v466
    %587 = vmatpush1.msra.mxu0 %v465
    %588 = vmatprep.subr.mxu0 %v468
    %589 = vmatpush1.msra.mxu0 %v467
    %590 = vmatprep.subr.mxu0 %v470
    %591 = vmatpush1.msra.mxu0 %v469
    %592 = vmatprep.subr.mxu0 %v472
    %593 = vmatpush1.msra.mxu0 %v471
    %594 = vmatprep.subr.mxu0 %v474
    %595 = vmatpush1.msra.mxu0 %v473
    %596 = vmatprep.subr.mxu0 %v476
    %597 = vmatpush1.msra.mxu0 %v475
    %598 = vmatprep.subr.mxu0 %v478
    %599 = vmatpush1.msra.mxu0 %v477
    %600 = vmatprep.subr.mxu0 %v480
    %601 = vmatpush1.msra.mxu0 %v479
    %602 = vmatprep.subr.mxu0 0.0
    %603 = vmatpush1.msra.mxu0 0.0
    %604 = vmatprep.subr.mxu0 0.0
    %605 = vmatpush1.msra.mxu0 0.0
    %606 = vmatprep.subr.mxu0 0.0
    %607 = vmatpush1.msra.mxu0 0.0
    %608 = vmatprep.subr.mxu0 0.0
    %609 = vmatpush1.msra.mxu0 0.0
    %610 = vmatprep.subr.mxu0 0.0
    %611 = vmatpush1.msra.mxu0 0.0
    %612 = vmatprep.subr.mxu0 0.0
    %613 = vmatpush1.msra.mxu0 0.0
    %614 = vmatprep.subr.mxu0 0.0
    %615 = vmatpush1.msra.mxu0 0.0
    %616 = vmatprep.subr.mxu0 0.0
    %617 = vmatpush1.msra.mxu0 0.0
    %618 = vmatprep.subr.mxu0 0.0
    %619 = vmatpush1.msra.mxu0 0.0
    %620 = vmatprep.subr.mxu0 0.0
    %621 = vmatpush1.msra.mxu0 0.0
    %622 = vmatprep.subr.mxu0 0.0
    %623 = vmatpush1.msra.mxu0 0.0
    %624 = vmatprep.subr.mxu0 0.0
    %625 = vmatpush1.msra.mxu0 0.0
    %626 = vmatprep.subr.mxu0 0.0
    %627 = vmatpush1.msra.mxu0 0.0
    %628 = vmatprep.subr.mxu0 0.0
    %629 = vmatpush1.msra.mxu0 0.0
    %630 = vmatprep.subr.mxu0 0.0
    %631 = vmatpush1.msra.mxu0 0.0
    %632 = vmatprep.subr.mxu0 0.0
    %633 = vmatpush1.msra.mxu0 0.0
    %634 = vmatprep.mubr.f32.mxu0 0.0
    %635 = vmatmul.mubr.f32.gmra.mrb[0].mxu0 %v377
    %v636 = vpop.f32.mrb[0].mxu0
    %v637 = vadd.f32 %v560, %v636
    %v638 = vpop.f32.mrb[0].mxu0
    %v639 = vadd.f32 %v562, %v638
    %640 = vmatprep.mubr.f32.mxu0 0.0
    %641 = vmatmul.mubr.f32.gmra.mrb[0].mxu0 %v382
    %v642 = vpop.f32.mrb[0].mxu0
    %v643 = vadd.f32 %v566, %v642
    %v644 = vpop.f32.mrb[0].mxu0
    %v645 = vadd.f32 %v568, %v644
    %646 = vdwg.mxu0
    %v647 = vmax.f32 %v637, 0.0
    %v648 = vmax.f32 %v639, 0.0
    %v649 = vmax.f32 %v643, 0.0
    %v650 = vmax.f32 %v645, 0.0
    %v651 = vld [vmem:[#allocation7] sm:$0xff]
    %v652 = vld [vmem:[#allocation7 + $0x8] sm:$0xff]
    %v653 = vld [vmem:[#allocation7 + $0x10] sm:$0xff]
    %v654 = vld [vmem:[#allocation7 + $0x18] sm:$0xff]
    %v655 = vld [vmem:[#allocation7 + $0x20] sm:$0xff]
    %v656 = vld [vmem:[#allocation7 + $0x28] sm:$0xff]
    %v657 = vld [vmem:[#allocation7 + $0x30] sm:$0xff]
    %v658 = vld [vmem:[#allocation7 + $0x38] sm:$0xff]
    %v659 = vld [vmem:[#allocation7 + $0x40] sm:$0xff]
    %v660 = vld [vmem:[#allocation7 + $0x48] sm:$0xff]
    %v661 = vld [vmem:[#allocation7 + $0x50] sm:$0xff]
    %v662 = vld [vmem:[#allocation7 + $0x58] sm:$0xff]
    %v663 = vld [vmem:[#allocation7 + $0x60] sm:$0xff]
    %v664 = vld [vmem:[#allocation7 + $0x68] sm:$0xff]
    %v665 = vld [vmem:[#allocation7 + $0x70] sm:$0xff]
    %v666 = vld [vmem:[#allocation7 + $0x78] sm:$0xff]
    %v667 = vld [vmem:[#allocation7 + $0x80] sm:$0xff]
    %v668 = vld [vmem:[#allocation7 + $0x88] sm:$0xff]
    %v669 = vld [vmem:[#allocation7 + $0x90] sm:$0xff]
    %v670 = vld [vmem:[#allocation7 + $0x98] sm:$0xff]
    %v671 = vld [vmem:[#allocation7 + $0xa0] sm:$0xff]
    %v672 = vld [vmem:[#allocation7 + $0xa8] sm:$0xff]
    %v673 = vld [vmem:[#allocation7 + $0xb0] sm:$0xff]
    %v674 = vld [vmem:[#allocation7 + $0xb8] sm:$0xff]
    %v675 = vld [vmem:[#allocation7 + $0xc0] sm:$0xff]
    %v676 = vld [vmem:[#allocation7 + $0xc8] sm:$0xff]
    %v677 = vld [vmem:[#allocation7 + $0xd0] sm:$0xff]
    %v678 = vld [vmem:[#allocation7 + $0xd8] sm:$0xff]
    %v679 = vld [vmem:[#allocation7 + $0xe0] sm:$0xff]
    %v680 = vld [vmem:[#allocation7 + $0xe8] sm:$0xff]
    %v681 = vld [vmem:[#allocation7 + $0xf0] sm:$0xff]
    %v682 = vld [vmem:[#allocation7 + $0xf8] sm:$0xff]
    %v683 = vld [vmem:[#allocation7 + $0x100] sm:$0xff]
    %v684 = vld [vmem:[#allocation7 + $0x108] sm:$0xff]
    %v685 = vld [vmem:[#allocation7 + $0x110] sm:$0xff]
    %v686 = vld [vmem:[#allocation7 + $0x118] sm:$0xff]
    %v687 = vld [vmem:[#allocation7 + $0x120] sm:$0xff]
    %v688 = vld [vmem:[#allocation7 + $0x128] sm:$0xff]
    %v689 = vld [vmem:[#allocation7 + $0x130] sm:$0xff]
    %v690 = vld [vmem:[#allocation7 + $0x138] sm:$0xff]
    %v691 = vld [vmem:[#allocation7 + $0x140] sm:$0xff]
    %v692 = vld [vmem:[#allocation7 + $0x148] sm:$0xff]
    %v693 = vld [vmem:[#allocation7 + $0x150] sm:$0xff]
    %v694 = vld [vmem:[#allocation7 + $0x158] sm:$0xff]
    %v695 = vld [vmem:[#allocation7 + $0x160] sm:$0xff]
    %v696 = vld [vmem:[#allocation7 + $0x168] sm:$0xff]
    %v697 = vld [vmem:[#allocation7 + $0x170] sm:$0xff]
    %v698 = vld [vmem:[#allocation7 + $0x178] sm:$0xff]
    %v699 = vld [vmem:[#allocation7 + $0x180] sm:$0xff]
    %v700 = vld [vmem:[#allocation7 + $0x188] sm:$0xff]
    %v701 = vld [vmem:[#allocation7 + $0x190] sm:$0xff]
    %v702 = vld [vmem:[#allocation7 + $0x198] sm:$0xff]
    %v703 = vld [vmem:[#allocation7 + $0x1a0] sm:$0xff]
    %v704 = vld [vmem:[#allocation7 + $0x1a8] sm:$0xff]
    %v705 = vld [vmem:[#allocation7 + $0x1b0] sm:$0xff]
    %v706 = vld [vmem:[#allocation7 + $0x1b8] sm:$0xff]
    %v707 = vld [vmem:[#allocation7 + $0x1c0] sm:$0xff]
    %v708 = vld [vmem:[#allocation7 + $0x1c8] sm:$0xff]
    %v709 = vld [vmem:[#allocation7 + $0x1d0] sm:$0xff]
    %v710 = vld [vmem:[#allocation7 + $0x1d8] sm:$0xff]
    %v711 = vld [vmem:[#allocation7 + $0x1e0] sm:$0xff]
    %v712 = vld [vmem:[#allocation7 + $0x1e8] sm:$0xff]
    %v713 = vld [vmem:[#allocation7 + $0x1f0] sm:$0xff]
    %v714 = vld [vmem:[#allocation7 + $0x1f8] sm:$0xff]
    %v715 = vld [vmem:[%s5] sm:$0x3]
    %v717 = vlaneseq
    %v718 = vshrl.u32 %v717, 7
    %v719 = vsub.s32 0, %v718
    %v720 = vrot.slane %v715, %v719
    %v721 = vlaneseq
    %v722 = vshrl.u32 %v721, 7
    %v723 = vsub.s32 1, %v722
    %v724 = vrot.slane %v715, %v723
    %727 = vmatprep.subr.mxu0 %v652
    %728 = vmatpush1.msra.mxu0 %v651
    %729 = vmatprep.subr.mxu0 %v654
    %730 = vmatpush1.msra.mxu0 %v653
    %731 = vmatprep.subr.mxu0 %v656
    %732 = vmatpush1.msra.mxu0 %v655
    %733 = vmatprep.subr.mxu0 %v658
    %734 = vmatpush1.msra.mxu0 %v657
    %735 = vmatprep.subr.mxu0 %v660
    %736 = vmatpush1.msra.mxu0 %v659
    %737 = vmatprep.subr.mxu0 %v662
    %738 = vmatpush1.msra.mxu0 %v661
    %739 = vmatprep.subr.mxu0 %v664
    %740 = vmatpush1.msra.mxu0 %v663
    %741 = vmatprep.subr.mxu0 %v666
    %742 = vmatpush1.msra.mxu0 %v665
    %743 = vmatprep.subr.mxu0 %v668
    %744 = vmatpush1.msra.mxu0 %v667
    %745 = vmatprep.subr.mxu0 %v670
    %746 = vmatpush1.msra.mxu0 %v669
    %747 = vmatprep.subr.mxu0 %v672
    %748 = vmatpush1.msra.mxu0 %v671
    %749 = vmatprep.subr.mxu0 %v674
    %750 = vmatpush1.msra.mxu0 %v673
    %751 = vmatprep.subr.mxu0 %v676
    %752 = vmatpush1.msra.mxu0 %v675
    %753 = vmatprep.subr.mxu0 %v678
    %754 = vmatpush1.msra.mxu0 %v677
    %755 = vmatprep.subr.mxu0 %v680
    %756 = vmatpush1.msra.mxu0 %v679
    %757 = vmatprep.subr.mxu0 %v682
    %758 = vmatpush1.msra.mxu0 %v681
    %759 = vmatprep.subr.mxu0 %v684
    %760 = vmatpush1.msra.mxu0 %v683
    %761 = vmatprep.subr.mxu0 %v686
    %762 = vmatpush1.msra.mxu0 %v685
    %763 = vmatprep.subr.mxu0 %v688
    %764 = vmatpush1.msra.mxu0 %v687
    %765 = vmatprep.subr.mxu0 %v690
    %766 = vmatpush1.msra.mxu0 %v689
    %767 = vmatprep.subr.mxu0 %v692
    %768 = vmatpush1.msra.mxu0 %v691
    %769 = vmatprep.subr.mxu0 %v694
    %770 = vmatpush1.msra.mxu0 %v693
    %771 = vmatprep.subr.mxu0 %v696
    %772 = vmatpush1.msra.mxu0 %v695
    %773 = vmatprep.subr.mxu0 %v698
    %774 = vmatpush1.msra.mxu0 %v697
    %775 = vmatprep.subr.mxu0 %v700
    %776 = vmatpush1.msra.mxu0 %v699
    %777 = vmatprep.subr.mxu0 %v702
    %778 = vmatpush1.msra.mxu0 %v701
    %779 = vmatprep.subr.mxu0 %v704
    %780 = vmatpush1.msra.mxu0 %v703
    %781 = vmatprep.subr.mxu0 %v706
    %782 = vmatpush1.msra.mxu0 %v705
    %783 = vmatprep.subr.mxu0 %v708
    %784 = vmatpush1.msra.mxu0 %v707
    %785 = vmatprep.subr.mxu0 %v710
    %786 = vmatpush1.msra.mxu0 %v709
    %787 = vmatprep.subr.mxu0 %v712
    %788 = vmatpush1.msra.mxu0 %v711
    %789 = vmatprep.subr.mxu0 %v714
    %790 = vmatpush1.msra.mxu0 %v713
    %791 = vmatprep.mubr.f32.mxu0 %v648
    %792 = vmatmul.mubr.f32.gmra.mrb[0].mxu0 %v647
    %v793 = vpop.f32.mrb[0].mxu0
    %v794 = vadd.f32 %v720, %v793
    %v795 = vpop.f32.mrb[0].mxu0
    %v796 = vadd.f32 %v724, %v795
    %797 = vmatprep.mubr.f32.mxu0 %v650
    %798 = vmatmul.mubr.f32.gmra.mrb[0].mxu0 %v649
    %v799 = vpop.f32.mrb[0].mxu0
    %v800 = vadd.f32 %v720, %v799
    %v801 = vpop.f32.mrb[0].mxu0
    %v802 = vadd.f32 %v724, %v801
    %803 = vdwg.mxu0
    %v804 = vmax.f32 %v794, 0.0
    %v805 = vmax.f32 %v796, 0.0
    %v806 = vmax.f32 %v800, 0.0
    %v807 = vmax.f32 %v802, 0.0
    %v808 = vld [vmem:[#allocation8] sm:$0xff]
    %v809 = vld [vmem:[#allocation8 + $0x8] sm:$0xff]
    %v810 = vld [vmem:[#allocation8 + $0x10] sm:$0xff]
    %v811 = vld [vmem:[#allocation8 + $0x18] sm:$0xff]
    %v812 = vld [vmem:[#allocation8 + $0x20] sm:$0xff]
    %v813 = vld [vmem:[#allocation8 + $0x28] sm:$0xff]
    %v814 = vld [vmem:[#allocation8 + $0x30] sm:$0xff]
    %v815 = vld [vmem:[#allocation8 + $0x38] sm:$0xff]
    %v816 = vld [vmem:[#allocation8 + $0x40] sm:$0xff]
    %v817 = vld [vmem:[#allocation8 + $0x48] sm:$0xff]
    %v818 = vld [vmem:[#allocation8 + $0x50] sm:$0xff]
    %v819 = vld [vmem:[#allocation8 + $0x58] sm:$0xff]
    %v820 = vld [vmem:[#allocation8 + $0x60] sm:$0xff]
    %v821 = vld [vmem:[#allocation8 + $0x68] sm:$0xff]
    %v822 = vld [vmem:[#allocation8 + $0x70] sm:$0xff]
    %v823 = vld [vmem:[#allocation8 + $0x78] sm:$0xff]
    %v824 = vld [vmem:[#allocation8 + $0x80] sm:$0xff]
    %v825 = vld [vmem:[#allocation8 + $0x88] sm:$0xff]
    %v826 = vld [vmem:[#allocation8 + $0x90] sm:$0xff]
    %v827 = vld [vmem:[#allocation8 + $0x98] sm:$0xff]
    %v828 = vld [vmem:[#allocation8 + $0xa0] sm:$0xff]
    %v829 = vld [vmem:[#allocation8 + $0xa8] sm:$0xff]
    %v830 = vld [vmem:[#allocation8 + $0xb0] sm:$0xff]
    %v831 = vld [vmem:[#allocation8 + $0xb8] sm:$0xff]
    %v832 = vld [vmem:[#allocation8 + $0xc0] sm:$0xff]
    %v833 = vld [vmem:[#allocation8 + $0xc8] sm:$0xff]
    %v834 = vld [vmem:[#allocation8 + $0xd0] sm:$0xff]
    %v835 = vld [vmem:[#allocation8 + $0xd8] sm:$0xff]
    %v836 = vld [vmem:[#allocation8 + $0xe0] sm:$0xff]
    %v837 = vld [vmem:[#allocation8 + $0xe8] sm:$0xff]
    %v838 = vld [vmem:[#allocation8 + $0xf0] sm:$0xff]
    %v839 = vld [vmem:[#allocation8 + $0xf8] sm:$0xff]
    %v840 = vld [vmem:[%s7] sm:$0x1]
    %v842 = vlaneseq
    %v843 = vshrl.u32 %v842, 7
    %v844 = vsub.s32 0, %v843
    %v845 = vrot.slane %v840, %v844
    %847 = vmatprep.subr.mxu0 0.0
    %848 = vmatpush1.msra.mxu0 %v808
    %849 = vmatprep.subr.mxu0 0.0
    %850 = vmatpush1.msra.mxu0 %v809
    %851 = vmatprep.subr.mxu0 0.0
    %852 = vmatpush1.msra.mxu0 %v810
    %853 = vmatprep.subr.mxu0 0.0
    %854 = vmatpush1.msra.mxu0 %v811
    %855 = vmatprep.subr.mxu0 0.0
    %856 = vmatpush1.msra.mxu0 %v812
    %857 = vmatprep.subr.mxu0 0.0
    %858 = vmatpush1.msra.mxu0 %v813
    %859 = vmatprep.subr.mxu0 0.0
    %860 = vmatpush1.msra.mxu0 %v814
    %861 = vmatprep.subr.mxu0 0.0
    %862 = vmatpush1.msra.mxu0 %v815
    %863 = vmatprep.subr.mxu0 0.0
    %864 = vmatpush1.msra.mxu0 %v816
    %865 = vmatprep.subr.mxu0 0.0
    %866 = vmatpush1.msra.mxu0 %v817
    %867 = vmatprep.subr.mxu0 0.0
    %868 = vmatpush1.msra.mxu0 %v818
    %869 = vmatprep.subr.mxu0 0.0
    %870 = vmatpush1.msra.mxu0 %v819
    %871 = vmatprep.subr.mxu0 0.0
    %872 = vmatpush1.msra.mxu0 %v820
    %873 = vmatprep.subr.mxu0 0.0
    %874 = vmatpush1.msra.mxu0 %v821
    %875 = vmatprep.subr.mxu0 0.0
    %876 = vmatpush1.msra.mxu0 %v822
    %877 = vmatprep.subr.mxu0 0.0
    %878 = vmatpush1.msra.mxu0 %v823
    %879 = vmatprep.subr.mxu0 0.0
    %880 = vmatpush1.msra.mxu0 %v824
    %881 = vmatprep.subr.mxu0 0.0
    %882 = vmatpush1.msra.mxu0 %v825
    %883 = vmatprep.subr.mxu0 0.0
    %884 = vmatpush1.msra.mxu0 %v826
    %885 = vmatprep.subr.mxu0 0.0
    %886 = vmatpush1.msra.mxu0 %v827
    %887 = vmatprep.subr.mxu0 0.0
    %888 = vmatpush1.msra.mxu0 %v828
    %889 = vmatprep.subr.mxu0 0.0
    %890 = vmatpush1.msra.mxu0 %v829
    %891 = vmatprep.subr.mxu0 0.0
    %892 = vmatpush1.msra.mxu0 %v830
    %893 = vmatprep.subr.mxu0 0.0
    %894 = vmatpush1.msra.mxu0 %v831
    %895 = vmatprep.subr.mxu0 0.0
    %896 = vmatpush1.msra.mxu0 %v832
    %897 = vmatprep.subr.mxu0 0.0
    %898 = vmatpush1.msra.mxu0 %v833
    %899 = vmatprep.subr.mxu0 0.0
    %900 = vmatpush1.msra.mxu0 %v834
    %901 = vmatprep.subr.mxu0 0.0
    %902 = vmatpush1.msra.mxu0 %v835
    %903 = vmatprep.subr.mxu0 0.0
    %904 = vmatpush1.msra.mxu0 %v836
    %905 = vmatprep.subr.mxu0 0.0
    %906 = vmatpush1.msra.mxu0 %v837
    %907 = vmatprep.subr.mxu0 0.0
    %908 = vmatpush1.msra.mxu0 %v838
    %909 = vmatprep.subr.mxu0 0.0
    %910 = vmatpush1.msra.mxu0 %v839
    %911 = vmatprep.mubr.f32.mxu0 %v805
    %912 = vmatmul.mubr.f32.gmra.mrb[0].mxu0 %v804
    %v913 = vpop.f32.mrb[0].mxu0
    %v914 = vadd.f32 %v845, %v913
    %v915 = vpop.f32.mrb[0].mxu0
    %916 = vmatprep.mubr.f32.mxu0 %v807
    %917 = vmatmul.mubr.f32.gmra.mrb[0].mxu0 %v806
    %v918 = vpop.f32.mrb[0].mxu0
    %v919 = vadd.f32 %v845, %v918
    %v920 = vpop.f32.mrb[0].mxu0
    %921 = vdwg.mxu0
    %922 = vst [vmem:[#allocation10] sm:$0xff] %v914
    %923 = vst [vmem:[#allocation10 + $0x8] sm:$0xff] %v919
    // Predicated region
    $region50: #{tpu_custom_call.1} parent=1 // pred_check
      _
    $region51: #{tpu_custom_call.1} parent=1 // pred_check_branch
      %925 = sbr.rel (0) target = $region53
    $region52: #{tpu_custom_call.1} parent=1 // pred_region
      %s927 = ssub.s32 256, 256
      %928 = vsyncadd [#allocation4], %s927
      %s929 = sshll.u32 [#allocation10], 4
      %s930 = int_to_ptr.vmem [resolvable:$true] %s929
      %935 = dma.vmem_to_hbm [thread:$0]  %s930, 256, %s8, [#allocation4], 128, 128, 8
    $region53: #{tpu_custom_call.1} parent=1 // pred_fallthru
      _
    // Predicated region
    $region54: #{tpu_custom_call.1} parent=1 // pred_check
      _
    $region55: #{tpu_custom_call.1} parent=1 // pred_check_branch
      %937 = sbr.rel (0) target = $region57
    $region56: #{tpu_custom_call.1} parent=1 // pred_region
      %938 = dma.done [#allocation4], 256
    $region57: #{tpu_custom_call.1} parent=1 // pred_fallthru
      _
    %939 = vsyncpa [#allocation3], 1
    %940 = vsyncpa [#allocation6], 1
    %941 = vsyncpa [#allocation9], 1
    %942 = vsyncpa [#allocation4], 1

</llo_original>
